<compile_context>
chip_gen: v6e
topology: v6e:2x2x1
jax: 0.10.0
libtpu: 0.0.40
codegen_flags: <defaults>
</compile_context>

<pallas_src>
import functools
import math

import jax
import jax.numpy as jnp
from jax import lax
from jax.experimental import pallas as pl
from jax.experimental.pallas import tpu as pltpu


def _mod(v, m):
    """v % m for int32 vregs; bitwise AND when m is a power of two."""
    if m & (m - 1) == 0:
        return jnp.bitwise_and(v, m - 1)
    return v % m


def _hessian_kernel(x_ref, o_ref, *, H, W, k, scale4):
    """Hessian-determinant response for `bt` whole images.

    The block holds bt images row-packed as a (bt * H // k, k * W) f32 tile:
    k consecutive image rows lie side by side along the lane axis (k chosen so
    k * W == 128 whenever possible).  Every 3-tap replicate-padded stencil is
    a roll plus a single select that fixes true image edges and packing seams.
    """
    x = x_ref[...]                                   # (TR, L) float32
    TR, L = x.shape
    Hp = H // k                                      # packed rows per image

    hw_roll_ok = (TR % 8 == 0) and (L % 128 == 0)    # f32 native tile aligned

    def roll_lanes(a, s):                            # out[:, j] = a[:, (j - s) % L]
        s = s % L
        if s == 0:
            return a
        if hw_roll_ok:
            return pltpu.roll(a, s, axis=1)          # XLU lane rotate
        return jnp.concatenate([a[:, L - s:], a[:, :L - s]], axis=1)

    def roll_rows(a, s):                             # out[i, :] = a[(i - s) % TR, :]
        s = s % TR
        if s == 0:
            return a
        if hw_roll_ok:
            return pltpu.roll(a, s, axis=0)          # XLU sublane rotate
        return jnp.concatenate([a[TR - s:, :], a[:TR - s, :]], axis=0)

    # Where each element sits inside its image (int32 iota + cheap compares).
    col = lax.broadcasted_iota(jnp.int32, (TR, L), 1)
    row = lax.broadcasted_iota(jnp.int32, (TR, L), 0)
    cimg = col if W == L else _mod(col, W)           # column inside the image
    rmod = row if Hp == TR else _mod(row, Hp)        # packed row inside the image
    first_seg = col < W                              # first image row of a lane-row
    last_seg = col >= L - W                          # last image row of a lane-row
    is_left = cimg == 0                              # image column 0
    is_right = cimg == W - 1                         # image column W-1
    is_top = (rmod == 0) & first_seg                 # image row 0
    is_bot = (rmod == Hp - 1) & last_seg             # image row H-1

    def shift_up(a):                                 # a[i-1, j], replicate at top
        if k == 1:
            prev = roll_rows(a, 1)
        else:
            t = roll_lanes(a, W)
            prev = jnp.where(first_seg, roll_rows(t, 1), t)
        return jnp.where(is_top, a, prev)

    def shift_down(a):                               # a[i+1, j], replicate at bottom
        if k == 1:
            nxt = roll_rows(a, -1)
        else:
            t = roll_lanes(a, -W)
            nxt = jnp.where(last_seg, roll_rows(t, -1), t)
        return jnp.where(is_bot, a, nxt)

    # Horizontal stencils first so x_l / x_r die before the vertical ones.
    x_l = jnp.where(is_left, x, roll_lanes(x, 1))    # x[i, j-1]
    x_r = jnp.where(is_right, x, roll_lanes(x, -1))  # x[i, j+1]
    gxx = x_l - 2.0 * x + x_r
    gx = 0.5 * x_l - 0.5 * x_r

    gyy = shift_up(x) - 2.0 * x + shift_down(x)
    gxy = 0.5 * shift_up(gx) - 0.5 * shift_down(gx)

    o_ref[...] = (jnp.abs(gxx * gyy - gxy * gxy) * scale4).astype(o_ref.dtype)


def _lane_packing(H, W):
    """Image rows packed per 128-lane row (pure reshape, no data movement)."""
    if W % 128 == 0:
        return 1                                     # already lane-dense
    if 128 % W == 0 and H % (128 // W) == 0:
        return 128 // W
    return 1                                         # fallback: W lanes per row


def _images_per_block(B, Hp, L, vmem_limit):
    """Images per grid step: fill the VMEM budget, keep >= 2 parallel steps."""
    lanes_padded = pl.cdiv(L, 128) * 128
    # ~16 live full-block f32 buffers: double-buffered in/out + stencil temps.
    block_budget = max(vmem_limit // 16, 64 * 1024)
    rows_budget = max(Hp, block_budget // (lanes_padded * 4))
    bt = max(1, min(B, rows_budget // Hp))
    if B >= 2:
        bt = min(bt, pl.cdiv(B, 2))                  # >= 2 steps -> both v7x TCs
    m = 8 // math.gcd(Hp, 8)                         # block rows must be % 8 == 0
    if bt >= m:
        bt = (bt // m) * m
    else:
        bt = min(B, m)                               # smallest legal granularity
    return bt


def hessian_resp(x, scale):
    """x: (B, 1, H, W) float32, scale: scalar. Returns (B, 1, H, W) float32."""
    B, C, H, W = x.shape
    assert C == 1, "HessianResp operates on single-channel input"
    scale4 = float(jnp.float32(scale) ** 4)          # baked into the kernel

    # Lane-dense, row-packed view: (B, 1, H, W) -> (B * H / k, k * W).
    k = _lane_packing(H, W)
    Hp = H // k
    L = k * W
    R = B * Hp
    x2 = x.reshape(R, L)

    # VMEM budget per generation (v5e/v6e: 128 MiB, v7x: 64 MiB).
    try:
        vmem_cap = int(pltpu.get_tpu_info().vmem_capacity_bytes)
    except Exception:
        vmem_cap = 64 * 1024 * 1024                  # conservative (v7x)
    vmem_limit = max(min(int(vmem_cap * 0.7), 100 * 1024 * 1024),
                     32 * 1024 * 1024)

    bt = _images_per_block(B, Hp, L, vmem_limit)
    block_rows = bt * Hp
    num_blocks = pl.cdiv(B, bt)

    # Pad the batch so every block starts at an image boundary.
    R_pad = num_blocks * block_rows
    if R_pad != R:
        x2 = jnp.pad(x2, ((0, R_pad - R), (0, 0)))

    # TODO(synk): for single images too large for one block, add an H-strip
    # grid axis with a +/-1-row halo instead of whole-image blocks.

    out2 = pl.pallas_call(
        functools.partial(_hessian_kernel, H=H, W=W, k=k, scale4=scale4),
        out_shape=jax.ShapeDtypeStruct((R_pad, L), jnp.float32),
        grid_spec=pl.GridSpec(
            grid=(num_blocks,),
            in_specs=[pl.BlockSpec((block_rows, L), lambda i: (i, 0))],
            out_specs=pl.BlockSpec((block_rows, L), lambda i: (i, 0)),
        ),
        compiler_params=pltpu.CompilerParams(
            dimension_semantics=("parallel",),
            vmem_limit_bytes=int(vmem_limit),
        ),
    )(x2)

    if R_pad != R:
        out2 = out2[:R]
    return out2.reshape(B, 1, H, W)


def hessian_resp_ref(x, scale):
    """Pure-JAX reference mirroring the PyTorch forward (replicate pads + convs)."""
    xp_w = jnp.pad(x, ((0, 0), (0, 0), (0, 0), (1, 1)), mode="edge")
    xp_h = jnp.pad(x, ((0, 0), (0, 0), (1, 1), (0, 0)), mode="edge")
    gxx = xp_w[..., :, :-2] - 2.0 * xp_w[..., :, 1:-1] + xp_w[..., :, 2:]
    gyy = xp_h[..., :-2, :] - 2.0 * xp_h[..., 1:-1, :] + xp_h[..., 2:, :]
    gx = 0.5 * xp_w[..., :, :-2] - 0.5 * xp_w[..., :, 2:]
    gxp_h = jnp.pad(gx, ((0, 0), (0, 0), (1, 1), (0, 0)), mode="edge")
    gxy = 0.5 * gxp_h[..., :-2, :] - 0.5 * gxp_h[..., 2:, :]
    return jnp.abs(gxx * gyy - gxy * gxy) * (jnp.float32(scale) ** 4)


if __name__ == "__main__":
    key = jax.random.PRNGKey(0)
    # 8 single-channel 16x16 images: packs to lane-dense (8, 128) f32 blocks
    # and gives two evenly sized "parallel" grid steps.
    B, C, H, W = 8, 1, 16, 16
    x = jax.random.normal(key, (B, C, H, W), dtype=jnp.float32)
    scale = 1.3

    out = jax.block_until_ready(hessian_resp(x, scale))
    ref = hessian_resp_ref(x, scale)

    assert out.shape == (B, C, H, W)
    # Tolerance allows f32 association differences under cancellation in the
    # determinant; any real stencil/mask bug produces O(0.1..10) errors.
    assert jnp.allclose(out, ref, atol=1e-4, rtol=1e-4), "mismatch vs reference"

    print("KERNEL_OK")
</pallas_src>

<mosaic_0001>
module attributes {stable_mosaic.version = 11 : i64} {
  func.func @_hessian_kernel(%arg0: i32, %arg1: memref<8x128xf32, #tpu.memory_space<vmem>>, %arg2: memref<8x128xf32, #tpu.memory_space<vmem>>) attributes {dimension_semantics = [#tpu.dimension_semantics<parallel>], iteration_bounds = array<i64: 2>, scalar_prefetch = 0 : i64, scratch_operands = 0 : i64, tpu.core_type = #tpu.core_type<tc>, window_params = [{transform_indices = @transform_0, window_bounds = array<i64: 8, 128>}, {transform_indices = @transform_1, window_bounds = array<i64: 8, 128>}]} {
    %c0 = arith.constant 0 : index
    %c0_0 = arith.constant 0 : index
    %0 = vector.load %arg1[%c0, %c0_0] : memref<8x128xf32, #tpu.memory_space<vmem>>, vector<8x128xf32>
    %1 = tpu.iota {dimensions = array<i32: 1>} : vector<8x128xi32>
    %2 = tpu.iota {dimensions = array<i32: 0>} : vector<8x128xi32>
    %c15_i32 = arith.constant 15 : i32
    %3 = vector.broadcast %c15_i32 : i32 to vector<8x128xi32>
    %4 = arith.andi %1, %3 : vector<8x128xi32>
    %c1_i32 = arith.constant 1 : i32
    %5 = vector.broadcast %c1_i32 : i32 to vector<8x128xi32>
    %6 = arith.andi %2, %5 : vector<8x128xi32>
    %c16_i32 = arith.constant 16 : i32
    %7 = vector.broadcast %c16_i32 : i32 to vector<8x128xi32>
    %8 = arith.cmpi slt, %1, %7 : vector<8x128xi32>
    %c112_i32 = arith.constant 112 : i32
    %9 = vector.broadcast %c112_i32 : i32 to vector<8x128xi32>
    %10 = arith.cmpi sge, %1, %9 : vector<8x128xi32>
    %c0_i32 = arith.constant 0 : i32
    %11 = vector.broadcast %c0_i32 : i32 to vector<8x128xi32>
    %12 = arith.cmpi eq, %4, %11 : vector<8x128xi32>
    %c15_i32_1 = arith.constant 15 : i32
    %13 = vector.broadcast %c15_i32_1 : i32 to vector<8x128xi32>
    %14 = arith.cmpi eq, %4, %13 : vector<8x128xi32>
    %c0_i32_2 = arith.constant 0 : i32
    %15 = vector.broadcast %c0_i32_2 : i32 to vector<8x128xi32>
    %16 = arith.cmpi eq, %6, %15 : vector<8x128xi32>
    %17 = arith.andi %16, %8 : vector<8x128xi1>
    %c1_i32_3 = arith.constant 1 : i32
    %18 = vector.broadcast %c1_i32_3 : i32 to vector<8x128xi32>
    %19 = arith.cmpi eq, %6, %18 : vector<8x128xi32>
    %20 = arith.andi %19, %10 : vector<8x128xi1>
    %c1_i32_4 = arith.constant 1 : i32
    %21 = tpu.dynamic_rotate %0 by %c1_i32_4 dim 1 : vector<8x128xf32>, i32 -> vector<8x128xf32>
    %22 = arith.select %12, %0, %21 : vector<8x128xi1>, vector<8x128xf32>
    %c127_i32 = arith.constant 127 : i32
    %23 = tpu.dynamic_rotate %0 by %c127_i32 dim 1 : vector<8x128xf32>, i32 -> vector<8x128xf32>
    %24 = arith.select %14, %0, %23 : vector<8x128xi1>, vector<8x128xf32>
    %cst = arith.constant 2.000000e+00 : f32
    %25 = vector.broadcast %cst : f32 to vector<8x128xf32>
    %26 = arith.mulf %25, %0 : vector<8x128xf32>
    %27 = arith.subf %22, %26 : vector<8x128xf32>
    %28 = arith.addf %27, %24 : vector<8x128xf32>
    %cst_5 = arith.constant 5.000000e-01 : f32
    %29 = vector.broadcast %cst_5 : f32 to vector<8x128xf32>
    %30 = arith.mulf %29, %22 : vector<8x128xf32>
    %cst_6 = arith.constant 5.000000e-01 : f32
    %31 = vector.broadcast %cst_6 : f32 to vector<8x128xf32>
    %32 = arith.mulf %31, %24 : vector<8x128xf32>
    %33 = arith.subf %30, %32 : vector<8x128xf32>
    %c16_i32_7 = arith.constant 16 : i32
    %34 = tpu.dynamic_rotate %0 by %c16_i32_7 dim 1 : vector<8x128xf32>, i32 -> vector<8x128xf32>
    %c1_i32_8 = arith.constant 1 : i32
    %35 = tpu.dynamic_rotate %34 by %c1_i32_8 dim 0 : vector<8x128xf32>, i32 -> vector<8x128xf32>
    %36 = arith.select %8, %35, %34 : vector<8x128xi1>, vector<8x128xf32>
    %37 = arith.select %17, %0, %36 : vector<8x128xi1>, vector<8x128xf32>
    %cst_9 = arith.constant 2.000000e+00 : f32
    %38 = vector.broadcast %cst_9 : f32 to vector<8x128xf32>
    %39 = arith.mulf %38, %0 : vector<8x128xf32>
    %40 = arith.subf %37, %39 : vector<8x128xf32>
    %c112_i32_10 = arith.constant 112 : i32
    %41 = tpu.dynamic_rotate %0 by %c112_i32_10 dim 1 : vector<8x128xf32>, i32 -> vector<8x128xf32>
    %c7_i32 = arith.constant 7 : i32
    %42 = tpu.dynamic_rotate %41 by %c7_i32 dim 0 : vector<8x128xf32>, i32 -> vector<8x128xf32>
    %43 = arith.select %10, %42, %41 : vector<8x128xi1>, vector<8x128xf32>
    %44 = arith.select %20, %0, %43 : vector<8x128xi1>, vector<8x128xf32>
    %45 = arith.addf %40, %44 : vector<8x128xf32>
    %c16_i32_11 = arith.constant 16 : i32
    %46 = tpu.dynamic_rotate %33 by %c16_i32_11 dim 1 : vector<8x128xf32>, i32 -> vector<8x128xf32>
    %c1_i32_12 = arith.constant 1 : i32
    %47 = tpu.dynamic_rotate %46 by %c1_i32_12 dim 0 : vector<8x128xf32>, i32 -> vector<8x128xf32>
    %48 = arith.select %8, %47, %46 : vector<8x128xi1>, vector<8x128xf32>
    %49 = arith.select %17, %33, %48 : vector<8x128xi1>, vector<8x128xf32>
    %cst_13 = arith.constant 5.000000e-01 : f32
    %50 = vector.broadcast %cst_13 : f32 to vector<8x128xf32>
    %51 = arith.mulf %50, %49 : vector<8x128xf32>
    %c112_i32_14 = arith.constant 112 : i32
    %52 = tpu.dynamic_rotate %33 by %c112_i32_14 dim 1 : vector<8x128xf32>, i32 -> vector<8x128xf32>
    %c7_i32_15 = arith.constant 7 : i32
    %53 = tpu.dynamic_rotate %52 by %c7_i32_15 dim 0 : vector<8x128xf32>, i32 -> vector<8x128xf32>
    %54 = arith.select %10, %53, %52 : vector<8x128xi1>, vector<8x128xf32>
    %55 = arith.select %20, %33, %54 : vector<8x128xi1>, vector<8x128xf32>
    %cst_16 = arith.constant 5.000000e-01 : f32
    %56 = vector.broadcast %cst_16 : f32 to vector<8x128xf32>
    %57 = arith.mulf %56, %55 : vector<8x128xf32>
    %58 = arith.subf %51, %57 : vector<8x128xf32>
    %59 = arith.mulf %28, %45 : vector<8x128xf32>
    %60 = arith.mulf %58, %58 : vector<8x128xf32>
    %61 = arith.subf %59, %60 : vector<8x128xf32>
    %62 = math.absf %61 : vector<8x128xf32>
    %cst_17 = arith.constant 2.85609937 : f32
    %63 = vector.broadcast %cst_17 : f32 to vector<8x128xf32>
    %64 = arith.mulf %62, %63 : vector<8x128xf32>
    %c0_18 = arith.constant 0 : index
    %c0_19 = arith.constant 0 : index
    %65 = vector.load %arg2[%c0_18, %c0_19] : memref<8x128xf32, #tpu.memory_space<vmem>>, vector<8x128xf32>
    tpu.vector_store %arg2[%c0_18, %c0_19], %64 {strides = array<i32>} : memref<8x128xf32, #tpu.memory_space<vmem>>, vector<8x128xf32>,
    return
  }
  func.func @transform_0(%arg0: i32) -> (i32, i32) {
    %c0_i32 = arith.constant 0 : i32
    %c0_i32_0 = arith.constant 0 : i32
    return %arg0, %c0_i32 : i32, i32
  }
  func.func @transform_1(%arg0: i32) -> (i32, i32) {
    %c0_i32 = arith.constant 0 : i32
    %c0_i32_0 = arith.constant 0 : i32
    return %arg0, %c0_i32 : i32, i32
  }
}

</mosaic_0001>

<llo_original>
// kernel: tpu_custom_call.1
$region0: #{tpu_custom_call.1}
  #allocation0 [shape = 'u32[]', space=smem, size = 0x4, offset = 0x4, fixed_abs, tag = 'smem constant byte address 0x4 - core index']
  #allocation1 [shape = 'u32[144,128]{1,0:T(1,128)}', space=vmem, size = 0x12000, scoped, tag = 'internal scratch']
  %s0 = inlined_call_operand.hbm [shape: f32[16,128], index: 0, kind: input, shape index: {}]
  %s1 = inlined_call_operand.hbm [shape: f32[16,128], index: 1, kind: output, shape index: {}]
  %s2 = sld [smem:[#allocation0]]
  $region41: #{tpu_custom_call.1} parent=0
    _
  %s4 = ssub.s32 1, %s2
  %s5 = scalar_select 0, %s4, %s2
  $region1: #{tpu_custom_call.1} parent=0
    #allocation2 [shape = 'u8[8192]{0}', space=vmem, size = 0x2000, scoped, tag = 'input window, operand 0']
    #allocation3 [shape = 's32[2]{0}', space=sflag, size = 0x8, scoped, tag = 'scoped memory for tpu_custom_call.1']
    #allocation4 [shape = 's32[2]{0}', space=sflag, size = 0x8, scoped, tag = 'scoped memory for tpu_custom_call.1']
    #allocation5 [shape = 'u8[8192]{0}', space=vmem, size = 0x2000, scoped, tag = 'output window, operand 0']
    %6 = vsyncpa [#allocation3], 0
    %s7 = scalar_lea.sflag [#allocation3], 1
    %8 = vsyncpa %s7, 0
    %9 = vsyncpa [#allocation4], 0
    %s10 = scalar_lea.sflag [#allocation4], 1
    %11 = vsyncpa %s10, 0
    loop: start=0, step=1, limit=4
    $region2: #{tpu_custom_call.1} parent=1 // loop_pre_header
      _
    $region3: #{tpu_custom_call.1} parent=1 // loop_header
      %s13 = sphi 0, %s17
      %p14 = scmp.ge.s32.totalorder %s13, 4
      %s23 = sphi 0, %s25
      %s26 = sphi 0, %s23
      %s27 = sphi 0, %s26
      %s43 = sphi 0, %s27
      %s49 = sphi 0, %s51
      %s52 = sphi 0, %s49
      %s53 = sphi 0, %s52
      %s69 = sphi 0, %s53
    $region4: #{tpu_custom_call.1} parent=1 // loop_header_branch
      %16 = sbr.rel (%p14) target = $region8
    $region5: #{tpu_custom_call.1} parent=1 // loop_body
      %s18 = ssub.s32 %s13, 1
      %s19 = ssub.s32 %s13, 2
      %s20 = sadd.s32 %s13, 1
      %s21 = ssub.s32 %s13, %s20
      %p22 = scmp.eq.s32.totalorder %s21, 0
      %s24 = sadd.s32 %s23, 1
      %s25 = scalar_select %p22, %s23, %s24
      %p28 = pneg %p22
      %p29 = scmp.eq.s32.totalorder %s13, 1
      %p30 = por %p28, %p29
      %p31 = scmp.ne.s32.totalorder %s23, %s26
      %p32 = scmp.eq.s32.totalorder %s13, 0
      %p33 = por %p31, %p32
      %p34 = scmp.ne.s32.totalorder %s23, %s26
      %p35 = scmp.eq.s32.totalorder %s18, 1
      %p36 = por %p34, %p35
      %p37 = scmp.ne.s32.totalorder %s26, %s27
      %p38 = scmp.eq.s32.totalorder %s18, 0
      %p39 = por %p37, %p38
      %p40 = scmp.ne.s32.totalorder %s26, %s27
      %p41 = scmp.eq.s32.totalorder %s19, 1
      %p42 = por %p40, %p41
      %p44 = scmp.ne.s32.totalorder %s27, %s43
      %p45 = scmp.eq.s32.totalorder %s19, 0
      %p46 = por %p44, %p45
      %s47 = ssub.s32 %s13, %s20
      %p48 = scmp.eq.s32.totalorder %s47, 0
      %s50 = sadd.s32 %s49, 1
      %s51 = scalar_select %p48, %s49, %s50
      %p54 = pneg %p48
      %p55 = scmp.eq.s32.totalorder %s13, 1
      %p56 = por %p54, %p55
      %p57 = scmp.ne.s32.totalorder %s49, %s52
      %p58 = scmp.eq.s32.totalorder %s13, 0
      %p59 = por %p57, %p58
      %p60 = scmp.ne.s32.totalorder %s49, %s52
      %p61 = scmp.eq.s32.totalorder %s18, 1
      %p62 = por %p60, %p61
      %p63 = scmp.ne.s32.totalorder %s52, %s53
      %p64 = scmp.eq.s32.totalorder %s18, 0
      %p65 = por %p63, %p64
      %p66 = scmp.ne.s32.totalorder %s52, %s53
      %p67 = scmp.eq.s32.totalorder %s19, 1
      %p68 = por %p66, %p67
      %p70 = scmp.ne.s32.totalorder %s53, %s69
      %p71 = scmp.eq.s32.totalorder %s19, 0
      %p72 = por %p70, %p71
      %p73 = scmp.le.s32.totalorder 1, %s13
      %p74 = scmp.lt.s32.totalorder %s13, 3
      %p75 = pnand %p73, %p74
      %p76 = pneg %p75
      // Predicated region
      $region9: #{tpu_custom_call.1} parent=5 // pred_check
        _
      $region10: #{tpu_custom_call.1} parent=5 // pred_check_branch
        %78 = sbr.rel (%p75) target = $region12
      $region11: #{tpu_custom_call.1} parent=5 // pred_region
        %s79 = ssub.s32 %s13, 1
      $region12: #{tpu_custom_call.1} parent=5 // pred_fallthru
        _
      %p80 = scmp.lt.s32.totalorder %s13, 2
      // Predicated region
      $region13: #{tpu_custom_call.1} parent=5 // pred_check
        %p81 = pneg %p80
      $region14: #{tpu_custom_call.1} parent=5 // pred_check_branch
        %83 = sbr.rel (%p81) target = $region16
      $region15: #{tpu_custom_call.1} parent=5 // pred_region
        // Predicated region
        $region17: #{tpu_custom_call.1} parent=15 // pred_check
          %p84 = pneg %p33
        $region18: #{tpu_custom_call.1} parent=15 // pred_check_branch
          %86 = sbr.rel (%p84) target = $region20
        $region19: #{tpu_custom_call.1} parent=15 // pred_region
          %s87 = sand.u32 %s23, 1
          %s88 = scalar_lea.sflag [#allocation3], %s87
          %s89 = sand.u32 %s23, 1
          %s90 = smul.addr %s89, 8
          %s91 = scalar_lea.vmem [#allocation2], %s90
          %s93 = ssub.s32 128, 128
          %94 = vsyncadd %s88, %s93
          %s95 = smul.addr %s13, 128
          %s96 = scalar_lea.hbm %s0, %s95
          %s98 = sshll.u32 %s91, 4
          %s99 = int_to_ptr.vmem [resolvable:$true] %s98
          %101 = dma.hbm_to_vmem [thread:$0]  %s96, 128, %s99, %s88
        $region20: #{tpu_custom_call.1} parent=15 // pred_fallthru
          _
      $region16: #{tpu_custom_call.1} parent=5 // pred_fallthru
        _
      %p102 = scmp.le.s32.totalorder 1, %s13
      %p103 = scmp.lt.s32.totalorder %s13, 3
      %p104 = pnand %p102, %p103
      %p105 = pneg %p104
      // Predicated region
      $region21: #{tpu_custom_call.1} parent=5 // pred_check
        _
      $region22: #{tpu_custom_call.1} parent=5 // pred_check_branch
        %107 = sbr.rel (%p104) target = $region24
      $region23: #{tpu_custom_call.1} parent=5 // pred_region
        %s108 = ssub.s32 %s13, 1
        %s109 = sand.u32 %s26, 1
        %s110 = scalar_lea.sflag [#allocation3], %s109
        %s111 = sand.u32 %s26, 1
        %s112 = smul.addr %s111, 8
        %s113 = scalar_lea.vmem [#allocation2], %s112
        // Predicated region
        $region25: #{tpu_custom_call.1} parent=23 // pred_check
          %p114 = pneg %p39
        $region26: #{tpu_custom_call.1} parent=23 // pred_check_branch
          %116 = sbr.rel (%p114) target = $region28
        $region27: #{tpu_custom_call.1} parent=23 // pred_region
          %117 = dma.done %s110, 128
        $region28: #{tpu_custom_call.1} parent=23 // pred_fallthru
          _
        %s118 = sand.u32 %s26, 1
        %s119 = scalar_lea.sflag [#allocation3], %s118
        %s120 = sand.u32 %s26, 1
        %s121 = smul.addr %s120, 8
        %s122 = scalar_lea.vmem [#allocation2], %s121
        %p123 = pneg %p39
        %p124 = pneg %p36
        %p125 = pneg %p65
        %p126 = pneg %p62
        %s127 = sand.u32 %s52, 1
        %s128 = scalar_lea.sflag [#allocation4], %s127
        %s129 = sand.u32 %s52, 1
        %s130 = smul.addr %s129, 8
        %s131 = scalar_lea.vmem [#allocation5], %s130
        %v132 = vld [vmem:[%s113] sm:$0xff]
        %v133 = vlaneseq
        %v134 = vand.u32 %v133, 127
        %v135 = vlaneseq
        %v136 = vshrl.u32 %v135, 7
        %v137 = vand.u32 %v134, 15
        %v138 = vand.u32 %v136, 1
        %vm139 = vcmp.lt.s32.totalorder %v134, 16
        %vm140 = vcmp.ge.s32.totalorder %v134, 112
        %vm141 = vcmp.eq.s32.totalorder %v137, 0
        %vm142 = vcmp.eq.s32.totalorder %v137, 15
        %vm143 = vcmp.eq.s32.totalorder %v138, 0
        %vm144 = vmand %vm143, %vm139
        %vm145 = vcmp.eq.s32.totalorder %v138, 1
        %vm146 = vmand %vm145, %vm140
        %147 = vrot.lane.b32.xlu0 %v132, 1
        %v148 = vpop.permute.xlu0 %147
        %v149 = vsel %vm141, %v132, %v148
        %150 = vrot.lane.b32.xlu0 %v132, 127
        %v151 = vpop.permute.xlu0 %150
        %v152 = vsel %vm142, %v132, %v151
        %v153 = vmul.f32 %v132, 2.0
        %v154 = vsub.f32 %v149, %v153
        %v155 = vadd.f32 %v154, %v152
        %v156 = vmul.f32 %v149, 0.5
        %v157 = vmul.f32 %v152, 0.5
        %v158 = vsub.f32 %v156, %v157
        %159 = vrot.lane.b32.xlu0 %v132, 16
        %v160 = vpop.permute.xlu0 %159
        %v161 = vrot.slane %v160, 7
        %v162 = vsel %vm139, %v161, %v160
        %v163 = vsel %vm144, %v132, %v162
        %v164 = vsub.f32 %v163, %v153
        %165 = vrot.lane.b32.xlu0 %v132, 112
        %v166 = vpop.permute.xlu0 %165
        %v167 = vrot.slane %v166, 1
        %v168 = vsel %vm140, %v167, %v166
        %v169 = vsel %vm146, %v132, %v168
        %v170 = vadd.f32 %v164, %v169
        %171 = vrot.lane.b32.xlu0 %v158, 16
        %v172 = vpop.permute.xlu0 %171
        %v173 = vrot.slane %v172, 7
        %v174 = vsel %vm139, %v173, %v172
        %v175 = vsel %vm144, %v158, %v174
        %v176 = vmul.f32 %v175, 0.5
        %177 = vrot.lane.b32.xlu0 %v158, 112
        %v178 = vpop.permute.xlu0 %177
        %v179 = vrot.slane %v178, 1
        %v180 = vsel %vm140, %v179, %v178
        %v181 = vsel %vm146, %v158, %v180
        %v182 = vmul.f32 %v181, 0.5
        %v183 = vsub.f32 %v176, %v182
        %v184 = vmul.f32 %v155, %v170
        %v185 = vmul.f32 %v183, %v183
        %v186 = vsub.f32 %v184, %v185
        %v187 = vand.u32 2147483647, %v186
        %v188 = vmul.f32 %v187, 2.8560994
        %189 = vst [vmem:[%s131] sm:$0xff] %v188
        %s190 = sand.u32 %s52, 1
        %s191 = scalar_lea.sflag [#allocation4], %s190
        %s192 = sand.u32 %s52, 1
        %s193 = smul.addr %s192, 8
        %s194 = scalar_lea.vmem [#allocation5], %s193
        // Predicated region
        $region29: #{tpu_custom_call.1} parent=23 // pred_check
          %p195 = pneg %p62
        $region30: #{tpu_custom_call.1} parent=23 // pred_check_branch
          %197 = sbr.rel (%p195) target = $region32
        $region31: #{tpu_custom_call.1} parent=23 // pred_region
          %s199 = ssub.s32 128, 128
          %200 = vsyncadd %s191, %s199
          %s201 = smul.addr %s18, 128
          %s202 = scalar_lea.hbm %s1, %s201
          %s204 = sshll.u32 %s194, 4
          %s205 = int_to_ptr.vmem [resolvable:$true] %s204
          %207 = dma.vmem_to_hbm [thread:$0]  %s205, 128, %s202, %s191
        $region32: #{tpu_custom_call.1} parent=23 // pred_fallthru
          _
      $region24: #{tpu_custom_call.1} parent=5 // pred_fallthru
        _
      %p208 = scmp.le.s32.totalorder 2, %s13
      // Predicated region
      $region33: #{tpu_custom_call.1} parent=5 // pred_check
        %p209 = pneg %p208
      $region34: #{tpu_custom_call.1} parent=5 // pred_check_branch
        %211 = sbr.rel (%p209) target = $region36
      $region35: #{tpu_custom_call.1} parent=5 // pred_region
        %s212 = ssub.s32 %s13, 2
        // Predicated region
        $region37: #{tpu_custom_call.1} parent=35 // pred_check
          %p213 = pneg %p68
        $region38: #{tpu_custom_call.1} parent=35 // pred_check_branch
          %215 = sbr.rel (%p213) target = $region40
        $region39: #{tpu_custom_call.1} parent=35 // pred_region
          %s216 = sand.u32 %s53, 1
          %s217 = scalar_lea.sflag [#allocation4], %s216
          %s218 = sand.u32 %s53, 1
          %s219 = smul.addr %s218, 8
          %s220 = scalar_lea.vmem [#allocation5], %s219
          %221 = dma.done %s217, 128
        $region40: #{tpu_custom_call.1} parent=35 // pred_fallthru
          _
      $region36: #{tpu_custom_call.1} parent=5 // pred_fallthru
        _
    $region6: #{tpu_custom_call.1} parent=1 // loop_footer
      %s17 = sadd.s32 1, %s13
    $region7: #{tpu_custom_call.1} parent=1 // loop_footer_branch
      %12 = sbr.rel target = $region3
    $region8: #{tpu_custom_call.1} parent=1 // loop_exit
      _
    %222 = vsyncpa [#allocation3], 1
    %s223 = scalar_lea.sflag [#allocation3], 1
    %224 = vsyncpa %s223, 1
    %225 = vsyncpa [#allocation4], 1
    %s226 = scalar_lea.sflag [#allocation4], 1
    %227 = vsyncpa %s226, 1

</llo_original>
